<compile_context>
chip_gen: v7x
topology: tpu7x:2x2x1
jax: 0.10.0
libtpu: 0.0.40
codegen_flags: <defaults>
</compile_context>

<pallas_src>
import jax
import jax.numpy as jnp
from jax.experimental import pallas as pl
from jax.experimental.pallas import tpu as pltpu

IN_FEATURES = 4      # CartPole-v0 observation_space.shape == (4,)
HIDDEN = 64          # nn.Linear(in_features, 64)
N_ACTIONS = 2        # CartPole-v0 action_space.n == 2

HIDDEN_PAD = 128     # lane-dense hidden width
OUT_MXU = 128        # layer-2 MXU output width (keeps the systolic array filled)
OUT_STORE = 8        # HBM output width (>= N_ACTIONS); 32 B/row writeback


def _round_up(n, m):
    return ((n + m - 1) // m) * m


def mlp_kernel(x_ref, w1_ref, b1_ref, w2_ref, b2_ref, o_ref):
    x = x_ref[...]                                        # (TB, 4) f32
    tb = x.shape[0]

    # ---- Layer 1 on the VPU: K=4 would massively under-fill the MXU, so do
    # 4 statically-unrolled broadcast multiply-adds instead. f32 throughout.
    h = jnp.broadcast_to(b1_ref[...], (tb, HIDDEN_PAD))   # (TB, 128)
    for k in range(IN_FEATURES):                          # static unroll
        h = h + x[:, k:k + 1] * w1_ref[k:k + 1, :]
    h = jnp.tanh(h)                                       # EUP, f32, lane-dense

    # ---- Layer 2 on the MXU: bf16 operands (bf16-native MXU), f32 accumulate.
    w2 = w2_ref[...]                                      # (128, 128) bf16
    q = jnp.dot(h.astype(w2.dtype), w2,
                preferred_element_type=jnp.float32)       # (TB, 128) f32

    # ---- Narrow store: only the first OUT_STORE(=8) lanes go back to HBM.
    # Output array's last dim == block last dim == 8, contiguous rows in HBM.
    o_ref[...] = (q[:, :OUT_STORE] + b2_ref[...]).astype(o_ref.dtype)


def prepare_params(w1, b1, w2, b2, *, matmul_dtype=jnp.bfloat16):
    """Pad/cast the weights ONCE (hoisted out of the per-step forward).

    Weights use (in_features, out_features) layout so y = x @ W + b,
    equivalent to PyTorch's x @ W.T with W of shape (out, in).
    Zero padding is numerically exact (padded rows/cols contribute 0).
    """
    w1_p = jnp.zeros((IN_FEATURES, HIDDEN_PAD), jnp.float32)
    w1_p = w1_p.at[:, :HIDDEN].set(w1.astype(jnp.float32))
    b1_p = jnp.zeros((1, HIDDEN_PAD), jnp.float32)
    b1_p = b1_p.at[0, :HIDDEN].set(b1.astype(jnp.float32))
    w2_p = jnp.zeros((HIDDEN_PAD, OUT_MXU), matmul_dtype)
    w2_p = w2_p.at[:HIDDEN, :N_ACTIONS].set(w2.astype(matmul_dtype))
    b2_p = jnp.zeros((1, OUT_STORE), jnp.float32)
    b2_p = b2_p.at[0, :N_ACTIONS].set(b2.astype(jnp.float32))
    return w1_p, b1_p, w2_p, b2_p


def _choose_tiling(B, batch_tile):
    # At least ceil(B / batch_tile) tiles; force >= 2 tiles once B is large
    # enough that splitting across both TensorCores (v7x) pays for the extra
    # ~0.35 us grid step. Pick TB to minimize pad waste for uneven B.
    n_tiles = pl.cdiv(B, batch_tile)
    if B >= 256:
        n_tiles = max(n_tiles, 2)
    TB = _round_up(pl.cdiv(B, n_tiles), 8)
    grid_b = pl.cdiv(B, TB)
    return TB, grid_b, grid_b * TB


def network_forward_prepared(x, params, *, batch_tile=2048):
    """Pallas forward of Linear(4,64) -> Tanh -> Linear(64,2). Returns (B, 2).

    `params` must come from prepare_params() (padded/cast once, reused every
    step). For tiny act()-style batches (B <= 8) the fixed pad/launch/slice
    overhead dominates; a plain jnp fallback would be even cheaper there, but
    the Pallas path is kept so the kernel covers all batch sizes.
    """
    w1_p, b1_p, w2_p, b2_p = params
    B = x.shape[0]
    TB, grid_b, B_pad = _choose_tiling(B, batch_tile)

    x_f = x.astype(jnp.float32)
    x_p = x_f if B_pad == B else jnp.pad(x_f, ((0, B_pad - B), (0, 0)))

    weight_bytes = (w1_p.size * w1_p.dtype.itemsize
                    + b1_p.size * b1_p.dtype.itemsize
                    + w2_p.size * w2_p.dtype.itemsize
                    + b2_p.size * b2_p.dtype.itemsize)
    cost = pl.CostEstimate(
        flops=2 * B_pad * IN_FEATURES * HIDDEN_PAD
              + 2 * B_pad * HIDDEN_PAD * OUT_MXU
              + 2 * B_pad * HIDDEN_PAD,                 # bias adds
        transcendentals=B_pad * HIDDEN_PAD,             # tanh
        bytes_accessed=4 * x_p.size                     # x read
                       + grid_b * weight_bytes          # weights per grid step
                       + 4 * B_pad * OUT_STORE,         # narrow output write
    )

    out = pl.pallas_call(
        mlp_kernel,
        out_shape=jax.ShapeDtypeStruct((B_pad, OUT_STORE), jnp.float32),
        grid_spec=pltpu.PrefetchScalarGridSpec(
            num_scalar_prefetch=0,
            grid=(grid_b,),
            in_specs=[
                pl.BlockSpec((TB, IN_FEATURES), lambda i: (i, 0)),          # x tile
                pl.BlockSpec((IN_FEATURES, HIDDEN_PAD), lambda i: (0, 0)),  # w1
                pl.BlockSpec((1, HIDDEN_PAD), lambda i: (0, 0)),            # b1
                pl.BlockSpec((HIDDEN_PAD, OUT_MXU), lambda i: (0, 0)),      # w2 (bf16)
                pl.BlockSpec((1, OUT_STORE), lambda i: (0, 0)),             # b2
            ],
            out_specs=pl.BlockSpec((TB, OUT_STORE), lambda i: (i, 0)),
        ),
        compiler_params=pltpu.CompilerParams(
            dimension_semantics=("parallel",),   # batch tiles shard across TCs on v7x
        ),
        cost_estimate=cost,
    )(x_p, w1_p, b1_p, w2_p, b2_p)

    return out[:B, :N_ACTIONS]


def network_forward(x, w1, b1, w2, b2, **kwargs):
    """Convenience wrapper: pads weights per call (prefer prepare_params + _prepared)."""
    return network_forward_prepared(x, prepare_params(w1, b1, w2, b2), **kwargs)


def init_params(key):
    """Deterministic init mimicking PyTorch nn.Linear default (uniform +-1/sqrt(fan_in))."""
    k1, k2, k3, k4 = jax.random.split(key, 4)
    bound1 = 1.0 / jnp.sqrt(jnp.float32(IN_FEATURES))
    bound2 = 1.0 / jnp.sqrt(jnp.float32(HIDDEN))
    w1 = jax.random.uniform(k1, (IN_FEATURES, HIDDEN), jnp.float32, -bound1, bound1)
    b1 = jax.random.uniform(k2, (HIDDEN,), jnp.float32, -bound1, bound1)
    w2 = jax.random.uniform(k3, (HIDDEN, N_ACTIONS), jnp.float32, -bound2, bound2)
    b2 = jax.random.uniform(k4, (N_ACTIONS,), jnp.float32, -bound2, bound2)
    return w1, b1, w2, b2


def reference_forward(x, w1, b1, w2, b2):
    return jnp.tanh(x @ w1 + b1) @ w2 + b2


if __name__ == "__main__":
    key = jax.random.PRNGKey(0)
    k_params, k_obs = jax.random.split(key)
    w1, b1, w2, b2 = init_params(k_params)

    # Pad/cast weights ONCE (outside the jitted per-step forward).
    params_p = prepare_params(w1, b1, w2, b2)
    params_p = jax.tree_util.tree_map(jax.block_until_ready, params_p)

    fwd = jax.jit(network_forward_prepared)

    # batch of 2 CartPole observations, each of dim 4 (act()-style path)
    x = jax.random.normal(k_obs, (2, IN_FEATURES), dtype=jnp.float32)
    q_pallas = fwd(x, params_p)
    jax.block_until_ready(q_pallas)

    q_ref = reference_forward(x, w1, b1, w2, b2)
    assert q_pallas.shape == (2, N_ACTIONS), q_pallas.shape
    # bf16 layer-2 operands -> ~0.2-0.4% relative error vs the f32 reference.
    assert jnp.allclose(q_pallas, q_ref, atol=2e-2, rtol=1e-2), (q_pallas, q_ref)

    # Batched / tiled path: uneven B exercises padding and the >=2-tile grid.
    xb = jax.random.normal(jax.random.PRNGKey(1), (1000, IN_FEATURES), jnp.float32)
    qb = fwd(xb, params_p)
    jax.block_until_ready(qb)
    assert qb.shape == (1000, N_ACTIONS)
    assert jnp.allclose(qb, reference_forward(xb, w1, b1, w2, b2),
                        atol=2e-2, rtol=1e-2)

    # `act` equivalent: greedy action for the first observation
    _action = int(jnp.argmax(q_pallas, axis=1)[0])
    assert _action in (0, 1)

    print("KERNEL_OK")
</pallas_src>

<mosaic_0001>
module attributes {stable_mosaic.version = 11 : i64} {
  func.func @mlp_kernel(%arg0: i32, %arg1: memref<8x4xf32, #tpu.memory_space<vmem>>, %arg2: memref<4x128xf32, #tpu.memory_space<vmem>>, %arg3: memref<1x128xf32, #tpu.memory_space<vmem>>, %arg4: memref<128x128xbf16, #tpu.memory_space<vmem>>, %arg5: memref<1x8xf32, #tpu.memory_space<vmem>>, %arg6: memref<8x8xf32, #tpu.memory_space<vmem>>) attributes {dimension_semantics = [#tpu.dimension_semantics<parallel>], iteration_bounds = array<i64: 1>, scalar_prefetch = 0 : i64, scratch_operands = 0 : i64, tpu.core_type = #tpu.core_type<tc>, window_params = [{transform_indices = @transform_0, window_bounds = array<i64: 8, 4>}, {pipeline_mode = #tpu.pipeline_mode<synchronous>, transform_indices = @transform_1, window_bounds = array<i64: 4, 128>}, {pipeline_mode = #tpu.pipeline_mode<synchronous>, transform_indices = @transform_2, window_bounds = array<i64: 1, 128>}, {pipeline_mode = #tpu.pipeline_mode<synchronous>, transform_indices = @transform_3, window_bounds = array<i64: 128, 128>}, {pipeline_mode = #tpu.pipeline_mode<synchronous>, transform_indices = @transform_4, window_bounds = array<i64: 1, 8>}, {transform_indices = @transform_5, window_bounds = array<i64: 8, 8>}]} {
    %c0 = arith.constant 0 : index
    %c0_0 = arith.constant 0 : index
    %0 = vector.load %arg1[%c0, %c0_0] : memref<8x4xf32, #tpu.memory_space<vmem>>, vector<8x4xf32>
    %c0_1 = arith.constant 0 : index
    %c0_2 = arith.constant 0 : index
    %1 = vector.load %arg3[%c0_1, %c0_2] : memref<1x128xf32, #tpu.memory_space<vmem>>, vector<1x128xf32>
    %2 = vector.shape_cast %1 : vector<1x128xf32> to vector<1x128xf32>
    %3 = vector.broadcast %2 : vector<1x128xf32> to vector<8x128xf32>
    %4 = vector.extract_strided_slice %0 {offsets = [0, 0], sizes = [8, 1], strides = [1, 1]} : vector<8x4xf32> to vector<8x1xf32>
    %c0_3 = arith.constant 0 : index
    %c0_4 = arith.constant 0 : index
    %5 = vector.load %arg2[%c0_3, %c0_4] : memref<4x128xf32, #tpu.memory_space<vmem>>, vector<1x128xf32>
    %6 = vector.broadcast %4 : vector<8x1xf32> to vector<8x128xf32>
    %7 = vector.broadcast %5 : vector<1x128xf32> to vector<8x128xf32>
    %8 = arith.mulf %6, %7 : vector<8x128xf32>
    %9 = arith.addf %3, %8 : vector<8x128xf32>
    %10 = vector.extract_strided_slice %0 {offsets = [0, 1], sizes = [8, 1], strides = [1, 1]} : vector<8x4xf32> to vector<8x1xf32>
    %c1 = arith.constant 1 : index
    %c0_5 = arith.constant 0 : index
    %11 = vector.load %arg2[%c1, %c0_5] : memref<4x128xf32, #tpu.memory_space<vmem>>, vector<1x128xf32>
    %12 = vector.broadcast %10 : vector<8x1xf32> to vector<8x128xf32>
    %13 = vector.broadcast %11 : vector<1x128xf32> to vector<8x128xf32>
    %14 = arith.mulf %12, %13 : vector<8x128xf32>
    %15 = arith.addf %9, %14 : vector<8x128xf32>
    %16 = vector.extract_strided_slice %0 {offsets = [0, 2], sizes = [8, 1], strides = [1, 1]} : vector<8x4xf32> to vector<8x1xf32>
    %c2 = arith.constant 2 : index
    %c0_6 = arith.constant 0 : index
    %17 = vector.load %arg2[%c2, %c0_6] : memref<4x128xf32, #tpu.memory_space<vmem>>, vector<1x128xf32>
    %18 = vector.broadcast %16 : vector<8x1xf32> to vector<8x128xf32>
    %19 = vector.broadcast %17 : vector<1x128xf32> to vector<8x128xf32>
    %20 = arith.mulf %18, %19 : vector<8x128xf32>
    %21 = arith.addf %15, %20 : vector<8x128xf32>
    %22 = vector.extract_strided_slice %0 {offsets = [0, 3], sizes = [8, 1], strides = [1, 1]} : vector<8x4xf32> to vector<8x1xf32>
    %c3 = arith.constant 3 : index
    %c0_7 = arith.constant 0 : index
    %23 = vector.load %arg2[%c3, %c0_7] : memref<4x128xf32, #tpu.memory_space<vmem>>, vector<1x128xf32>
    %24 = vector.broadcast %22 : vector<8x1xf32> to vector<8x128xf32>
    %25 = vector.broadcast %23 : vector<1x128xf32> to vector<8x128xf32>
    %26 = arith.mulf %24, %25 : vector<8x128xf32>
    %27 = arith.addf %21, %26 : vector<8x128xf32>
    %28 = math.tanh %27 : vector<8x128xf32>
    %c0_8 = arith.constant 0 : index
    %c0_9 = arith.constant 0 : index
    %29 = vector.load %arg4[%c0_8, %c0_9] : memref<128x128xbf16, #tpu.memory_space<vmem>>, vector<128x128xbf16>
    %30 = arith.truncf %28 : vector<8x128xf32> to vector<8x128xbf16>
    %cst = arith.constant dense<0.000000e+00> : vector<8x128xf32>
    %31 = tpu.matmul %30, %29, %cst {dimension_numbers = #tpu.dot_dimension_numbers<[1], [0], [0], [1], [0, 0, 1, 1], [], []>} : vector<8x128xbf16>, vector<128x128xbf16>, vector<8x128xf32> -> vector<8x128xf32>
    %32 = vector.extract_strided_slice %31 {offsets = [0, 0], sizes = [8, 8], strides = [1, 1]} : vector<8x128xf32> to vector<8x8xf32>
    %c0_10 = arith.constant 0 : index
    %c0_11 = arith.constant 0 : index
    %33 = vector.load %arg5[%c0_10, %c0_11] : memref<1x8xf32, #tpu.memory_space<vmem>>, vector<1x8xf32>
    %34 = vector.broadcast %33 : vector<1x8xf32> to vector<8x8xf32>
    %35 = arith.addf %32, %34 : vector<8x8xf32>
    %c0_12 = arith.constant 0 : index
    %c0_13 = arith.constant 0 : index
    %36 = vector.load %arg6[%c0_12, %c0_13] : memref<8x8xf32, #tpu.memory_space<vmem>>, vector<8x8xf32>
    tpu.vector_store %arg6[%c0_12, %c0_13], %35 {strides = array<i32>} : memref<8x8xf32, #tpu.memory_space<vmem>>, vector<8x8xf32>,
    return
  }
  func.func @transform_0(%arg0: i32) -> (i32, i32) {
    %c0_i32 = arith.constant 0 : i32
    %c0_i32_0 = arith.constant 0 : i32
    return %arg0, %c0_i32 : i32, i32
  }
  func.func @transform_1(%arg0: i32) -> (i32, i32) {
    %c0_i32 = arith.constant 0 : i32
    %c0_i32_0 = arith.constant 0 : i32
    %c0_i32_1 = arith.constant 0 : i32
    return %c0_i32, %c0_i32_0 : i32, i32
  }
  func.func @transform_2(%arg0: i32) -> (i32, i32) {
    %c0_i32 = arith.constant 0 : i32
    %c0_i32_0 = arith.constant 0 : i32
    %c0_i32_1 = arith.constant 0 : i32
    return %c0_i32, %c0_i32_0 : i32, i32
  }
  func.func @transform_3(%arg0: i32) -> (i32, i32) {
    %c0_i32 = arith.constant 0 : i32
    %c0_i32_0 = arith.constant 0 : i32
    %c0_i32_1 = arith.constant 0 : i32
    return %c0_i32, %c0_i32_0 : i32, i32
  }
  func.func @transform_4(%arg0: i32) -> (i32, i32) {
    %c0_i32 = arith.constant 0 : i32
    %c0_i32_0 = arith.constant 0 : i32
    %c0_i32_1 = arith.constant 0 : i32
    return %c0_i32, %c0_i32_0 : i32, i32
  }
  func.func @transform_5(%arg0: i32) -> (i32, i32) {
    %c0_i32 = arith.constant 0 : i32
    %c0_i32_0 = arith.constant 0 : i32
    return %arg0, %c0_i32 : i32, i32
  }
}

</mosaic_0001>

<llo_original>
// kernel: network_forward_prepared.1
$region0: #{network_forward_prepared.1}
  #allocation0 [shape = 'u32[]', space=smem, size = 0x4, offset = 0x4, fixed_abs, tag = 'smem constant byte address 0x4 - core index']
  #allocation1 [shape = 'u32[144,128]{1,0:T(1,128)}', space=vmem, size = 0x12000, scoped, tag = 'internal scratch']
  %s0 = inlined_call_operand.vmem [shape: f32[8,4], index: 0, kind: input, shape index: {}]
  %s1 = inlined_call_operand.vmem [shape: f32[4,128], index: 1, kind: input, shape index: {}]
  %s2 = inlined_call_operand.vmem [shape: f32[1,128], index: 2, kind: input, shape index: {}]
  %s3 = inlined_call_operand.hbm [shape: bf16[128,128], index: 3, kind: input, shape index: {}]
  %s4 = inlined_call_operand.vmem [shape: f32[1,8], index: 4, kind: input, shape index: {}]
  %s5 = inlined_call_operand.vmem [shape: f32[8,8], index: 5, kind: output, shape index: {}]
  %s6 = sld [smem:[#allocation0]]
  $region34: #{network_forward_prepared.1} parent=0
    _
  %s8 = ssub.s32 1, %s6
  %s9 = scalar_select 0, %s8, %s6
  $region1: #{network_forward_prepared.1} parent=0
    #allocation2 [shape = 'u8[32768]{0}', space=vmem, size = 0x8000, scoped, tag = 'input window, operand 3, single buffered']
    #allocation3 [shape = 's32[1]{0}', space=sflag, size = 0x4, scoped, tag = 'scoped memory for network_forward_prepared.1']
    %10 = vsyncpa [#allocation3], 0
    // Predicated region
    $region2: #{network_forward_prepared.1} parent=1 // pred_check
      _
    $region3: #{network_forward_prepared.1} parent=1 // pred_check_branch
      %12 = sbr.rel (0) target = $region5
    $region4: #{network_forward_prepared.1} parent=1 // pred_region
      _
    $region5: #{network_forward_prepared.1} parent=1 // pred_fallthru
      _
    // Predicated region
    $region6: #{network_forward_prepared.1} parent=1 // pred_check
      _
    $region7: #{network_forward_prepared.1} parent=1 // pred_check_branch
      %14 = sbr.rel (0) target = $region9
    $region8: #{network_forward_prepared.1} parent=1 // pred_region
      _
    $region9: #{network_forward_prepared.1} parent=1 // pred_fallthru
      _
    // Predicated region
    $region10: #{network_forward_prepared.1} parent=1 // pred_check
      _
    $region11: #{network_forward_prepared.1} parent=1 // pred_check_branch
      %16 = sbr.rel (0) target = $region13
    $region12: #{network_forward_prepared.1} parent=1 // pred_region
      _
    $region13: #{network_forward_prepared.1} parent=1 // pred_fallthru
      _
    // Predicated region
    $region14: #{network_forward_prepared.1} parent=1 // pred_check
      _
    $region15: #{network_forward_prepared.1} parent=1 // pred_check_branch
      %18 = sbr.rel (0) target = $region17
    $region16: #{network_forward_prepared.1} parent=1 // pred_region
      %s20 = ssub.s32 1024, 1024
      %21 = vsyncadd [#allocation3], %s20
      %s22 = sshll.u32 [#allocation2], 4
      %s23 = int_to_ptr.vmem [resolvable:$true] %s22
      %28 = dma.hbm_to_vmem [thread:$0]  %s3, 1024, %s23, [#allocation3], 64, 64, 4
    $region17: #{network_forward_prepared.1} parent=1 // pred_fallthru
      _
    // Predicated region
    $region18: #{network_forward_prepared.1} parent=1 // pred_check
      _
    $region19: #{network_forward_prepared.1} parent=1 // pred_check_branch
      %30 = sbr.rel (0) target = $region21
    $region20: #{network_forward_prepared.1} parent=1 // pred_region
      _
    $region21: #{network_forward_prepared.1} parent=1 // pred_fallthru
      _
    // Predicated region
    $region22: #{network_forward_prepared.1} parent=1 // pred_check
      _
    $region23: #{network_forward_prepared.1} parent=1 // pred_check_branch
      %32 = sbr.rel (0) target = $region25
    $region24: #{network_forward_prepared.1} parent=1 // pred_region
      %33 = dma.done [#allocation3], 1024
    $region25: #{network_forward_prepared.1} parent=1 // pred_fallthru
      _
    %v35 = vld [vmem:[%s0] sm:$0xff]
    %v36 = vld [vmem:[%s2] sm:$0x1]
    %v38 = vlaneseq
    %v39 = vshrl.u32 %v38, 7
    %v40 = vsub.s32 0, %v39
    %v41 = vrot.slane %v36, %v40
    %v43 = vld [vmem:[%s1] sm:$0x1]
    %45 = vset.pattern.permute.xlu0 0
    %46 = vperm.xlu0 %45, %v35
    %v47 = vpop.permute.xlu0 %46
    %v49 = vlaneseq
    %v50 = vshrl.u32 %v49, 7
    %v51 = vsub.s32 0, %v50
    %v52 = vrot.slane %v43, %v51
    %v53 = vmul.f32 %v47, %v52
    %v54 = vadd.f32 %v41, %v53
    %v55 = vld [vmem:[%s1 + $0x1] sm:$0x1]
    %56 = vset.pattern.permute.xlu0 1
    %57 = vperm.xlu0 %56, %v35
    %v58 = vpop.permute.xlu0 %57
    %v60 = vlaneseq
    %v61 = vshrl.u32 %v60, 7
    %v62 = vsub.s32 0, %v61
    %v63 = vrot.slane %v55, %v62
    %v64 = vmul.f32 %v58, %v63
    %v65 = vadd.f32 %v54, %v64
    %v66 = vld [vmem:[%s1 + $0x2] sm:$0x1]
    %67 = vset.pattern.permute.xlu0 2
    %68 = vperm.xlu0 %67, %v35
    %v69 = vpop.permute.xlu0 %68
    %v71 = vlaneseq
    %v72 = vshrl.u32 %v71, 7
    %v73 = vsub.s32 0, %v72
    %v74 = vrot.slane %v66, %v73
    %v75 = vmul.f32 %v69, %v74
    %v76 = vadd.f32 %v65, %v75
    %v77 = vld [vmem:[%s1 + $0x3] sm:$0x1]
    %78 = vset.pattern.permute.xlu0 3
    %79 = vperm.xlu0 %78, %v35
    %v80 = vpop.permute.xlu0 %79
    %v82 = vlaneseq
    %v83 = vshrl.u32 %v82, 7
    %v84 = vsub.s32 0, %v83
    %v85 = vrot.slane %v77, %v84
    %v86 = vmul.f32 %v80, %v85
    %v87 = vadd.f32 %v76, %v86
    %v88 = vtanh.pop %v87
    %v89 = vld [vmem:[#allocation2] sm:$0xf]
    %v90 = vld [vmem:[#allocation2 + $0x4] sm:$0xf]
    %v91 = vld [vmem:[#allocation2 + $0x8] sm:$0xf]
    %v92 = vld [vmem:[#allocation2 + $0xc] sm:$0xf]
    %v93 = vld [vmem:[#allocation2 + $0x10] sm:$0xf]
    %v94 = vld [vmem:[#allocation2 + $0x14] sm:$0xf]
    %v95 = vld [vmem:[#allocation2 + $0x18] sm:$0xf]
    %v96 = vld [vmem:[#allocation2 + $0x1c] sm:$0xf]
    %v97 = vld [vmem:[#allocation2 + $0x20] sm:$0xf]
    %v98 = vld [vmem:[#allocation2 + $0x24] sm:$0xf]
    %v99 = vld [vmem:[#allocation2 + $0x28] sm:$0xf]
    %v100 = vld [vmem:[#allocation2 + $0x2c] sm:$0xf]
    %v101 = vld [vmem:[#allocation2 + $0x30] sm:$0xf]
    %v102 = vld [vmem:[#allocation2 + $0x34] sm:$0xf]
    %v103 = vld [vmem:[#allocation2 + $0x38] sm:$0xf]
    %v104 = vld [vmem:[#allocation2 + $0x3c] sm:$0xf]
    %v105 = vpack.c.bf16 %v88, %v88
    %v122 = vunpack.c.l.b16 %v89
    %v123 = vunpack.c.l.b16 %v90
    %v124 = vunpack.c.l.b16 %v91
    %v125 = vunpack.c.l.b16 %v92
    %v126 = vunpack.c.l.b16 %v93
    %v127 = vunpack.c.l.b16 %v94
    %v128 = vunpack.c.l.b16 %v95
    %v129 = vunpack.c.l.b16 %v96
    %v130 = vunpack.c.l.b16 %v97
    %v131 = vunpack.c.l.b16 %v98
    %v132 = vunpack.c.l.b16 %v99
    %v133 = vunpack.c.l.b16 %v100
    %v134 = vunpack.c.l.b16 %v101
    %v135 = vunpack.c.l.b16 %v102
    %v136 = vunpack.c.l.b16 %v103
    %v137 = vunpack.c.l.b16 %v104
    %v138 = vpack.c.b16 %v123, %v122
    %v139 = vpack.c.b16 %v125, %v124
    %v140 = vpack.c.b16 %v127, %v126
    %v141 = vpack.c.b16 %v129, %v128
    %v142 = vpack.c.b16 %v131, %v130
    %v143 = vpack.c.b16 %v133, %v132
    %v144 = vpack.c.b16 %v135, %v134
    %v145 = vpack.c.b16 %v137, %v136
    %154 = vmatprep.subr.bf16.mxu0 0
    %155 = vmatpush1.bf16.msra.mxu0 %v138
    %156 = vmatprep.subr.bf16.mxu0 0
    %157 = vmatpush1.bf16.msra.mxu0 %v139
    %158 = vmatprep.subr.bf16.mxu0 0
    %159 = vmatpush1.bf16.msra.mxu0 %v140
    %160 = vmatprep.subr.bf16.mxu0 0
    %161 = vmatpush1.bf16.msra.mxu0 %v141
    %162 = vmatprep.subr.bf16.mxu0 0
    %163 = vmatpush1.bf16.msra.mxu0 %v142
    %164 = vmatprep.subr.bf16.mxu0 0
    %165 = vmatpush1.bf16.msra.mxu0 %v143
    %166 = vmatprep.subr.bf16.mxu0 0
    %167 = vmatpush1.bf16.msra.mxu0 %v144
    %168 = vmatprep.subr.bf16.mxu0 0
    %169 = vmatpush1.bf16.msra.mxu0 %v145
    %170 = vmatprep.subr.bf16.mxu0 0
    %171 = vmatpush1.bf16.msra.mxu0 0
    %172 = vmatprep.subr.bf16.mxu0 0
    %173 = vmatpush1.bf16.msra.mxu0 0
    %174 = vmatprep.subr.bf16.mxu0 0
    %175 = vmatpush1.bf16.msra.mxu0 0
    %176 = vmatprep.subr.bf16.mxu0 0
    %177 = vmatpush1.bf16.msra.mxu0 0
    %178 = vmatprep.subr.bf16.mxu0 0
    %179 = vmatpush1.bf16.msra.mxu0 0
    %180 = vmatprep.subr.bf16.mxu0 0
    %181 = vmatpush1.bf16.msra.mxu0 0
    %182 = vmatprep.subr.bf16.mxu0 0
    %183 = vmatpush1.bf16.msra.mxu0 0
    %184 = vmatprep.subr.bf16.mxu0 0
    %185 = vmatpush1.bf16.msra.mxu0 0
    %186 = vmatprep.mubr.bf16.mxu0 0
    %187 = vmatmul.mubr.bf16.gmra.mrb[0].mxu0 %v105
    %v188 = vpop.f32.mrb[0].mxu0
    %v189 = vadd.f32 0.0, %v188
    %v190 = vpop.f32.mrb[0].mxu0
    %v191 = vpop.f32.mrb[0].mxu0
    %v192 = vpop.f32.mrb[0].mxu0
    %193 = vdwg.mxu0
    %v194 = vld [vmem:[%s4] sm:$0x1]
    %v196 = vlaneseq
    %v197 = vshrl.u32 %v196, 7
    %v198 = vsub.s32 0, %v197
    %v199 = vrot.slane %v194, %v198
    %v201 = vadd.f32 %v189, %v199
    %vm202 = vcmask 64512
    %203 = vst.msk [vmem:[%s5] sm:$0xff] %vm202, %v201
    // Predicated region
    $region26: #{network_forward_prepared.1} parent=1 // pred_check
      _
    $region27: #{network_forward_prepared.1} parent=1 // pred_check_branch
      %205 = sbr.rel (0) target = $region29
    $region28: #{network_forward_prepared.1} parent=1 // pred_region
      _
    $region29: #{network_forward_prepared.1} parent=1 // pred_fallthru
      _
    // Predicated region
    $region30: #{network_forward_prepared.1} parent=1 // pred_check
      _
    $region31: #{network_forward_prepared.1} parent=1 // pred_check_branch
      %207 = sbr.rel (0) target = $region33
    $region32: #{network_forward_prepared.1} parent=1 // pred_region
      _
    $region33: #{network_forward_prepared.1} parent=1 // pred_fallthru
      _
    %208 = vsyncpa [#allocation3], 1

</llo_original>
